<compile_context>
chip_gen: v5e
topology: v5e:2x2
jax: 0.10.0
libtpu: 0.0.40
codegen_flags: <defaults>
</compile_context>

<pallas_src>
import functools

import jax
import jax.numpy as jnp
from jax.experimental import pallas as pl
from jax.experimental.pallas import tpu as pltpu


def _feature_extractor_kernel(x_ref, wl_ref, bl_ref, wih_ref, bihf_ref,
                              whh_ref, bhn_ref, out_ref, hn_ref, gi_ref,
                              *, bt, seq_len, hidden_dim, unroll):
    H = hidden_dim

    # ---- Phase 1 (off the serial path): Linear -> LeakyReLU -> fused input
    # projection for all three gates of every timestep at once. -------------
    x = x_ref[...]                                              # (S*bt, D_in)
    lin = jnp.dot(x, wl_ref[...], preferred_element_type=jnp.float32) + bl_ref[...]
    act = jnp.maximum(lin, 0.2 * lin)                           # LeakyReLU(0.2)
    # gi = act @ W_ih + (b_ih with b_hr|b_hz folded in)  -> (S*bt, 3H)
    gi_ref[...] = (jnp.dot(act, wih_ref[...], preferred_element_type=jnp.float32)
                   + bihf_ref[...])

    w_hh = whh_ref[...]                                         # (H, 3H) fused
    b_hn = jnp.broadcast_to(bhn_ref[...], (bt, H))              # hoisted broadcast

    # ---- Phase 2: the recurrence (one fused matmul + gates per step) -------
    def step(t, h):
        row = pl.multiple_of(t * bt, 8)                         # sublane-aligned
        gi_t = gi_ref[pl.ds(row, bt), :]                        # (bt, 3H)
        gh = jnp.dot(h, w_hh, preferred_element_type=jnp.float32)  # (bt, 3H)
        rz = jax.nn.sigmoid(gi_t[:, :2 * H] + gh[:, :2 * H])    # fused r|z sigmoid
        r = rz[:, :H]
        z = rz[:, H:]
        n = jnp.tanh(gi_t[:, 2 * H:] + r * (gh[:, 2 * H:] + b_hn))
        h_new = (1.0 - z) * n + z * h
        out_ref[t] = h_new.astype(out_ref.dtype)
        return h_new

    h0 = jnp.zeros((bt, H), jnp.float32)
    h_last = jax.lax.fori_loop(0, seq_len, step, h0, unroll=unroll)
    hn_ref[...] = h_last.astype(hn_ref.dtype)                   # written once


def feature_extractor_forward(x, params, *, batch_tile=None):
    """x: (B, S, D_in) float32. Returns (output (B,S,H), h_n (1,B,H))."""
    B, S, D_in = x.shape
    H = params["w_lin"].shape[1]

    # Batch tile = multiple of 8 sublanes; one "parallel" grid step per tile
    # (lets v7x spread independent batch slices over both TensorCores).
    if batch_tile is None:
        bt = max(8, ((B + 7) // 8) * 8)                 # single tile
    else:
        bt = max(8, ((batch_tile + 7) // 8) * 8)
    BP = ((B + bt - 1) // bt) * bt
    NB = BP // bt

    # (B,S,D) -> time-major, pad batch, group rows per batch tile, flatten.
    x_sb = jnp.transpose(x, (1, 0, 2))                          # (S, B, D)
    x_sb = jnp.pad(x_sb, ((0, 0), (0, BP - B), (0, 0)))         # (S, BP, D)
    x_t = x_sb.reshape(S, NB, bt, D_in).transpose(1, 0, 2, 3)   # (NB, S, bt, D)
    x_t = x_t.reshape(NB, S * bt, D_in)

    # Keep W_ih / W_hh fused as (H, 3H) (gate order r|z|n, like PyTorch).
    # Fold the r/z hidden biases into the input-side bias; only b_hn remains
    # inside the recurrence.
    b_ihf = params["b_ih"].at[:, :2 * H].add(params["b_hh"][:, :2 * H])  # (1, 3H)
    b_hn = params["b_hh"][:, 2 * H:]                                      # (1, H)

    kernel = functools.partial(_feature_extractor_kernel, bt=bt, seq_len=S,
                               hidden_dim=H, unroll=min(S, 8))

    # Raise the scoped VMEM limit only if the resident set (lane-padded) would
    # exceed the conservative default (v5e: 16 MiB scoped, v7x: 32 MiB).
    def _lanes(n):
        return ((n + 127) // 128) * 128
    est_vmem = 4 * S * bt * (2 * _lanes(D_in) + 2 * _lanes(H) + _lanes(3 * H))
    est_vmem += 4 * H * (2 * _lanes(3 * H) + _lanes(H))          # weights (tiny)
    compiler_kwargs = dict(dimension_semantics=("parallel",))
    if est_vmem > (12 << 20):
        compiler_kwargs["vmem_limit_bytes"] = min(2 * est_vmem, 100 << 20)

    out_t, hn_t = pl.pallas_call(
        kernel,
        out_shape=(
            jax.ShapeDtypeStruct((NB, S, bt, H), jnp.float32),   # per-step hiddens
            jax.ShapeDtypeStruct((NB, bt, H), jnp.float32),      # final hidden
        ),
        grid=(NB,),
        in_specs=[
            pl.BlockSpec((None, S * bt, D_in), lambda b: (b, 0, 0)),  # x rows
            pl.BlockSpec((D_in, H), lambda b: (0, 0)),                # W_lin
            pl.BlockSpec((1, H), lambda b: (0, 0)),                   # b_lin
            pl.BlockSpec((H, 3 * H), lambda b: (0, 0)),               # W_ih (fused)
            pl.BlockSpec((1, 3 * H), lambda b: (0, 0)),               # b_ih + b_hr|b_hz
            pl.BlockSpec((H, 3 * H), lambda b: (0, 0)),               # W_hh (fused)
            pl.BlockSpec((1, H), lambda b: (0, 0)),                   # b_hn
        ],
        out_specs=(
            pl.BlockSpec((None, S, bt, H), lambda b: (b, 0, 0, 0)),
            pl.BlockSpec((None, bt, H), lambda b: (b, 0, 0)),
        ),
        scratch_shapes=[pltpu.VMEM((S * bt, 3 * H), jnp.float32)],    # fused gi
        compiler_params=pltpu.CompilerParams(**compiler_kwargs),
    )(x_t, params["w_lin"], params["b_lin"], params["w_ih"], b_ihf,
      params["w_hh"], b_hn)

    # (NB, S, bt, H) -> (B, S, H); padded batch rows are independent garbage.
    out_sb = out_t.transpose(1, 0, 2, 3).reshape(S, BP, H)[:, :B, :]
    output = jnp.transpose(out_sb, (1, 0, 2))
    h_n = hn_t.reshape(BP, H)[:B][None, :, :]
    return output, h_n


def init_params(key, input_dim, hidden_dim):
    """Deterministic synthetic parameters matching the PyTorch module shapes."""
    ks = jax.random.split(key, 6)
    H = hidden_dim
    s_lin = 1.0 / jnp.sqrt(input_dim)
    s_gru = 1.0 / jnp.sqrt(H)
    return {
        # nn.Linear(input_dim, H): weight (H, D_in) stored transposed (D_in, H)
        "w_lin": jax.random.uniform(ks[0], (input_dim, H), jnp.float32, -s_lin, s_lin),
        "b_lin": jax.random.uniform(ks[1], (1, H), jnp.float32, -s_lin, s_lin),
        # nn.GRU weight_ih_l0 (3H, H) stored transposed (H, 3H), gate order r|z|n
        "w_ih": jax.random.uniform(ks[2], (H, 3 * H), jnp.float32, -s_gru, s_gru),
        "b_ih": jax.random.uniform(ks[3], (1, 3 * H), jnp.float32, -s_gru, s_gru),
        "w_hh": jax.random.uniform(ks[4], (H, 3 * H), jnp.float32, -s_gru, s_gru),
        "b_hh": jax.random.uniform(ks[5], (1, 3 * H), jnp.float32, -s_gru, s_gru),
    }


def _reference_forward(x, params):
    """Pure-JAX reference (same math) for a sanity check."""
    lin = x @ params["w_lin"] + params["b_lin"][0]
    act = jnp.where(lin >= 0, lin, 0.2 * lin)
    B, H = act.shape[0], params["w_lin"].shape[1]

    def step(h, x_t):
        gi = x_t @ params["w_ih"] + params["b_ih"][0]
        gh = h @ params["w_hh"] + params["b_hh"][0]
        r = jax.nn.sigmoid(gi[:, :H] + gh[:, :H])
        z = jax.nn.sigmoid(gi[:, H:2 * H] + gh[:, H:2 * H])
        n = jnp.tanh(gi[:, 2 * H:] + r * gh[:, 2 * H:])
        h_new = (1.0 - z) * n + z * h
        return h_new, h_new

    h0 = jnp.zeros((B, H), jnp.float32)
    h_last, outs = jax.lax.scan(step, h0, jnp.transpose(act, (1, 0, 2)))
    return jnp.transpose(outs, (1, 0, 2)), h_last[None]


if __name__ == "__main__":
    B, S, D_in, H = 2, 8, 16, 32
    key = jax.random.PRNGKey(0)
    k_x, k_p = jax.random.split(key)

    x = jax.random.normal(k_x, (B, S, D_in), jnp.float32)
    params = init_params(k_p, D_in, H)

    output, h_n = feature_extractor_forward(x, params)
    jax.block_until_ready((output, h_n))

    ref_out, ref_hn = _reference_forward(x, params)
    assert output.shape == (B, S, H) and h_n.shape == (1, B, H)
    assert jnp.allclose(output, ref_out, atol=1e-5, rtol=1e-5)
    assert jnp.allclose(h_n, ref_hn, atol=1e-5, rtol=1e-5)

    print("KERNEL_OK")
</pallas_src>

<mosaic_0001>
module attributes {stable_mosaic.version = 11 : i64} {
  func.func @_feature_extractor_kernel(%arg0: i32, %arg1: memref<1x64x16xf32, #tpu.memory_space<vmem>>, %arg2: memref<16x32xf32, #tpu.memory_space<vmem>>, %arg3: memref<1x32xf32, #tpu.memory_space<vmem>>, %arg4: memref<32x96xf32, #tpu.memory_space<vmem>>, %arg5: memref<1x96xf32, #tpu.memory_space<vmem>>, %arg6: memref<32x96xf32, #tpu.memory_space<vmem>>, %arg7: memref<1x32xf32, #tpu.memory_space<vmem>>, %arg8: memref<1x8x8x32xf32, #tpu.memory_space<vmem>>, %arg9: memref<1x8x32xf32, #tpu.memory_space<vmem>>, %arg10: memref<64x96xf32, #tpu.memory_space<vmem>>) attributes {dimension_semantics = [#tpu.dimension_semantics<parallel>], iteration_bounds = array<i64: 1>, scalar_prefetch = 0 : i64, scratch_operands = 1 : i64, tpu.core_type = #tpu.core_type<tc>, window_params = [{transform_indices = @transform_0, window_bounds = array<i64: 1, 64, 16>}, {pipeline_mode = #tpu.pipeline_mode<synchronous>, transform_indices = @transform_1, window_bounds = array<i64: 16, 32>}, {pipeline_mode = #tpu.pipeline_mode<synchronous>, transform_indices = @transform_2, window_bounds = array<i64: 1, 32>}, {pipeline_mode = #tpu.pipeline_mode<synchronous>, transform_indices = @transform_3, window_bounds = array<i64: 32, 96>}, {pipeline_mode = #tpu.pipeline_mode<synchronous>, transform_indices = @transform_4, window_bounds = array<i64: 1, 96>}, {pipeline_mode = #tpu.pipeline_mode<synchronous>, transform_indices = @transform_5, window_bounds = array<i64: 32, 96>}, {pipeline_mode = #tpu.pipeline_mode<synchronous>, transform_indices = @transform_6, window_bounds = array<i64: 1, 32>}, {transform_indices = @transform_7, window_bounds = array<i64: 1, 8, 8, 32>}, {transform_indices = @transform_8, window_bounds = array<i64: 1, 8, 32>}]} {
    %c0 = arith.constant 0 : index
    %c0_0 = arith.constant 0 : index
    %c0_1 = arith.constant 0 : index
    %0 = vector.load %arg1[%c0, %c0_0, %c0_1] : memref<1x64x16xf32, #tpu.memory_space<vmem>>, vector<1x64x16xf32>
    %1 = vector.shape_cast %0 : vector<1x64x16xf32> to vector<64x16xf32>
    %c0_2 = arith.constant 0 : index
    %c0_3 = arith.constant 0 : index
    %2 = vector.load %arg2[%c0_2, %c0_3] : memref<16x32xf32, #tpu.memory_space<vmem>>, vector<16x32xf32>
    %cst = arith.constant dense<0.000000e+00> : vector<64x32xf32>
    %3 = tpu.matmul %1, %2, %cst {dimension_numbers = #tpu.dot_dimension_numbers<[1], [0], [0], [1], [0, 0, 1, 1], [], []>} : vector<64x16xf32>, vector<16x32xf32>, vector<64x32xf32> -> vector<64x32xf32>
    %c0_4 = arith.constant 0 : index
    %c0_5 = arith.constant 0 : index
    %4 = vector.load %arg3[%c0_4, %c0_5] : memref<1x32xf32, #tpu.memory_space<vmem>>, vector<1x32xf32>
    %5 = vector.broadcast %4 : vector<1x32xf32> to vector<64x32xf32>
    %6 = arith.addf %3, %5 : vector<64x32xf32>
    %cst_6 = arith.constant 2.000000e-01 : f32
    %7 = vector.broadcast %cst_6 : f32 to vector<64x32xf32>
    %8 = arith.mulf %7, %6 : vector<64x32xf32>
    %9 = arith.maximumf %6, %8 : vector<64x32xf32>
    %c0_7 = arith.constant 0 : index
    %c0_8 = arith.constant 0 : index
    %10 = vector.load %arg4[%c0_7, %c0_8] : memref<32x96xf32, #tpu.memory_space<vmem>>, vector<32x96xf32>
    %cst_9 = arith.constant dense<0.000000e+00> : vector<64x96xf32>
    %11 = tpu.matmul %9, %10, %cst_9 {dimension_numbers = #tpu.dot_dimension_numbers<[1], [0], [0], [1], [0, 0, 1, 1], [], []>} : vector<64x32xf32>, vector<32x96xf32>, vector<64x96xf32> -> vector<64x96xf32>
    %c0_10 = arith.constant 0 : index
    %c0_11 = arith.constant 0 : index
    %12 = vector.load %arg5[%c0_10, %c0_11] : memref<1x96xf32, #tpu.memory_space<vmem>>, vector<1x96xf32>
    %13 = vector.broadcast %12 : vector<1x96xf32> to vector<64x96xf32>
    %14 = arith.addf %11, %13 : vector<64x96xf32>
    %c0_12 = arith.constant 0 : index
    %c0_13 = arith.constant 0 : index
    %15 = vector.load %arg10[%c0_12, %c0_13] : memref<64x96xf32, #tpu.memory_space<vmem>>, vector<64x96xf32>
    tpu.vector_store %arg10[%c0_12, %c0_13], %14 {strides = array<i32>} : memref<64x96xf32, #tpu.memory_space<vmem>>, vector<64x96xf32>,
    %c0_14 = arith.constant 0 : index
    %c0_15 = arith.constant 0 : index
    %16 = vector.load %arg6[%c0_14, %c0_15] : memref<32x96xf32, #tpu.memory_space<vmem>>, vector<32x96xf32>
    %c0_16 = arith.constant 0 : index
    %c0_17 = arith.constant 0 : index
    %17 = vector.load %arg7[%c0_16, %c0_17] : memref<1x32xf32, #tpu.memory_space<vmem>>, vector<1x32xf32>
    %18 = vector.shape_cast %17 : vector<1x32xf32> to vector<1x32xf32>
    %19 = vector.broadcast %18 : vector<1x32xf32> to vector<8x32xf32>
    %cst_18 = arith.constant 0.000000e+00 : f32
    %20 = vector.broadcast %cst_18 : f32 to vector<8x32xf32>
    %c0_i32 = arith.constant 0 : i32
    %c8_i32 = arith.constant 8 : i32
    %21 = arith.muli %c0_i32, %c8_i32 : i32
    %22 = tpu.assume_multiple %21, 8 : i32
    %23 = arith.index_cast %22 : i32 to index
    %c0_19 = arith.constant 0 : index
    %24 = vector.load %arg10[%23, %c0_19] : memref<64x96xf32, #tpu.memory_space<vmem>>, vector<8x96xf32>
    %cst_20 = arith.constant dense<0.000000e+00> : vector<8x96xf32>
    %25 = tpu.matmul %20, %16, %cst_20 {dimension_numbers = #tpu.dot_dimension_numbers<[1], [0], [0], [1], [0, 0, 1, 1], [], []>} : vector<8x32xf32>, vector<32x96xf32>, vector<8x96xf32> -> vector<8x96xf32>
    %26 = vector.extract_strided_slice %24 {offsets = [0, 0], sizes = [8, 64], strides = [1, 1]} : vector<8x96xf32> to vector<8x64xf32>
    %27 = vector.extract_strided_slice %25 {offsets = [0, 0], sizes = [8, 64], strides = [1, 1]} : vector<8x96xf32> to vector<8x64xf32>
    %28 = arith.addf %26, %27 : vector<8x64xf32>
    %29 = arith.negf %28 : vector<8x64xf32>
    %30 = math.exp %29 : vector<8x64xf32>
    %cst_21 = arith.constant 1.000000e+00 : f32
    %31 = vector.broadcast %cst_21 : f32 to vector<8x64xf32>
    %32 = arith.addf %31, %30 : vector<8x64xf32>
    %33 = arith.divf %31, %32 : vector<8x64xf32>
    %34 = vector.extract_strided_slice %33 {offsets = [0, 0], sizes = [8, 32], strides = [1, 1]} : vector<8x64xf32> to vector<8x32xf32>
    %35 = vector.extract_strided_slice %33 {offsets = [0, 32], sizes = [8, 32], strides = [1, 1]} : vector<8x64xf32> to vector<8x32xf32>
    %36 = vector.extract_strided_slice %24 {offsets = [0, 64], sizes = [8, 32], strides = [1, 1]} : vector<8x96xf32> to vector<8x32xf32>
    %37 = vector.extract_strided_slice %25 {offsets = [0, 64], sizes = [8, 32], strides = [1, 1]} : vector<8x96xf32> to vector<8x32xf32>
    %38 = arith.addf %37, %19 : vector<8x32xf32>
    %39 = arith.mulf %34, %38 : vector<8x32xf32>
    %40 = arith.addf %36, %39 : vector<8x32xf32>
    %41 = math.tanh %40 : vector<8x32xf32>
    %cst_22 = arith.constant 1.000000e+00 : f32
    %42 = vector.broadcast %cst_22 : f32 to vector<8x32xf32>
    %43 = arith.subf %42, %35 : vector<8x32xf32>
    %44 = arith.mulf %43, %41 : vector<8x32xf32>
    %45 = arith.mulf %35, %20 : vector<8x32xf32>
    %46 = arith.addf %44, %45 : vector<8x32xf32>
    %c0_23 = arith.constant 0 : index
    %47 = arith.index_cast %c0_i32 : i32 to index
    %c0_24 = arith.constant 0 : index
    %c0_25 = arith.constant 0 : index
    %48 = vector.load %arg8[%c0_23, %47, %c0_24, %c0_25] : memref<1x8x8x32xf32, #tpu.memory_space<vmem>>, vector<1x1x8x32xf32>
    %49 = vector.shape_cast %48 : vector<1x1x8x32xf32> to vector<8x32xf32>
    %50 = vector.shape_cast %46 : vector<8x32xf32> to vector<1x1x8x32xf32>
    tpu.vector_store %arg8[%c0_23, %47, %c0_24, %c0_25], %50 {strides = array<i32>} : memref<1x8x8x32xf32, #tpu.memory_space<vmem>>, vector<1x1x8x32xf32>,
    %c1_i32 = arith.constant 1 : i32
    %c8_i32_26 = arith.constant 8 : i32
    %51 = arith.muli %c1_i32, %c8_i32_26 : i32
    %52 = tpu.assume_multiple %51, 8 : i32
    %53 = arith.index_cast %52 : i32 to index
    %c0_27 = arith.constant 0 : index
    %54 = vector.load %arg10[%53, %c0_27] : memref<64x96xf32, #tpu.memory_space<vmem>>, vector<8x96xf32>
    %cst_28 = arith.constant dense<0.000000e+00> : vector<8x96xf32>
    %55 = tpu.matmul %46, %16, %cst_28 {dimension_numbers = #tpu.dot_dimension_numbers<[1], [0], [0], [1], [0, 0, 1, 1], [], []>} : vector<8x32xf32>, vector<32x96xf32>, vector<8x96xf32> -> vector<8x96xf32>
    %56 = vector.extract_strided_slice %54 {offsets = [0, 0], sizes = [8, 64], strides = [1, 1]} : vector<8x96xf32> to vector<8x64xf32>
    %57 = vector.extract_strided_slice %55 {offsets = [0, 0], sizes = [8, 64], strides = [1, 1]} : vector<8x96xf32> to vector<8x64xf32>
    %58 = arith.addf %56, %57 : vector<8x64xf32>
    %59 = arith.negf %58 : vector<8x64xf32>
    %60 = math.exp %59 : vector<8x64xf32>
    %cst_29 = arith.constant 1.000000e+00 : f32
    %61 = vector.broadcast %cst_29 : f32 to vector<8x64xf32>
    %62 = arith.addf %61, %60 : vector<8x64xf32>
    %63 = arith.divf %61, %62 : vector<8x64xf32>
    %64 = vector.extract_strided_slice %63 {offsets = [0, 0], sizes = [8, 32], strides = [1, 1]} : vector<8x64xf32> to vector<8x32xf32>
    %65 = vector.extract_strided_slice %63 {offsets = [0, 32], sizes = [8, 32], strides = [1, 1]} : vector<8x64xf32> to vector<8x32xf32>
    %66 = vector.extract_strided_slice %54 {offsets = [0, 64], sizes = [8, 32], strides = [1, 1]} : vector<8x96xf32> to vector<8x32xf32>
    %67 = vector.extract_strided_slice %55 {offsets = [0, 64], sizes = [8, 32], strides = [1, 1]} : vector<8x96xf32> to vector<8x32xf32>
    %68 = arith.addf %67, %19 : vector<8x32xf32>
    %69 = arith.mulf %64, %68 : vector<8x32xf32>
    %70 = arith.addf %66, %69 : vector<8x32xf32>
    %71 = math.tanh %70 : vector<8x32xf32>
    %cst_30 = arith.constant 1.000000e+00 : f32
    %72 = vector.broadcast %cst_30 : f32 to vector<8x32xf32>
    %73 = arith.subf %72, %65 : vector<8x32xf32>
    %74 = arith.mulf %73, %71 : vector<8x32xf32>
    %75 = arith.mulf %65, %46 : vector<8x32xf32>
    %76 = arith.addf %74, %75 : vector<8x32xf32>
    %c0_31 = arith.constant 0 : index
    %77 = arith.index_cast %c1_i32 : i32 to index
    %c0_32 = arith.constant 0 : index
    %c0_33 = arith.constant 0 : index
    %78 = vector.load %arg8[%c0_31, %77, %c0_32, %c0_33] : memref<1x8x8x32xf32, #tpu.memory_space<vmem>>, vector<1x1x8x32xf32>
    %79 = vector.shape_cast %78 : vector<1x1x8x32xf32> to vector<8x32xf32>
    %80 = vector.shape_cast %76 : vector<8x32xf32> to vector<1x1x8x32xf32>
    tpu.vector_store %arg8[%c0_31, %77, %c0_32, %c0_33], %80 {strides = array<i32>} : memref<1x8x8x32xf32, #tpu.memory_space<vmem>>, vector<1x1x8x32xf32>,
    %c2_i32 = arith.constant 2 : i32
    %c8_i32_34 = arith.constant 8 : i32
    %81 = arith.muli %c2_i32, %c8_i32_34 : i32
    %82 = tpu.assume_multiple %81, 8 : i32
    %83 = arith.index_cast %82 : i32 to index
    %c0_35 = arith.constant 0 : index
    %84 = vector.load %arg10[%83, %c0_35] : memref<64x96xf32, #tpu.memory_space<vmem>>, vector<8x96xf32>
    %cst_36 = arith.constant dense<0.000000e+00> : vector<8x96xf32>
    %85 = tpu.matmul %76, %16, %cst_36 {dimension_numbers = #tpu.dot_dimension_numbers<[1], [0], [0], [1], [0, 0, 1, 1], [], []>} : vector<8x32xf32>, vector<32x96xf32>, vector<8x96xf32> -> vector<8x96xf32>
    %86 = vector.extract_strided_slice %84 {offsets = [0, 0], sizes = [8, 64], strides = [1, 1]} : vector<8x96xf32> to vector<8x64xf32>
    %87 = vector.extract_strided_slice %85 {offsets = [0, 0], sizes = [8, 64], strides = [1, 1]} : vector<8x96xf32> to vector<8x64xf32>
    %88 = arith.addf %86, %87 : vector<8x64xf32>
    %89 = arith.negf %88 : vector<8x64xf32>
    %90 = math.exp %89 : vector<8x64xf32>
    %cst_37 = arith.constant 1.000000e+00 : f32
    %91 = vector.broadcast %cst_37 : f32 to vector<8x64xf32>
    %92 = arith.addf %91, %90 : vector<8x64xf32>
    %93 = arith.divf %91, %92 : vector<8x64xf32>
    %94 = vector.extract_strided_slice %93 {offsets = [0, 0], sizes = [8, 32], strides = [1, 1]} : vector<8x64xf32> to vector<8x32xf32>
    %95 = vector.extract_strided_slice %93 {offsets = [0, 32], sizes = [8, 32], strides = [1, 1]} : vector<8x64xf32> to vector<8x32xf32>
    %96 = vector.extract_strided_slice %84 {offsets = [0, 64], sizes = [8, 32], strides = [1, 1]} : vector<8x96xf32> to vector<8x32xf32>
    %97 = vector.extract_strided_slice %85 {offsets = [0, 64], sizes = [8, 32], strides = [1, 1]} : vector<8x96xf32> to vector<8x32xf32>
    %98 = arith.addf %97, %19 : vector<8x32xf32>
    %99 = arith.mulf %94, %98 : vector<8x32xf32>
    %100 = arith.addf %96, %99 : vector<8x32xf32>
    %101 = math.tanh %100 : vector<8x32xf32>
    %cst_38 = arith.constant 1.000000e+00 : f32
    %102 = vector.broadcast %cst_38 : f32 to vector<8x32xf32>
    %103 = arith.subf %102, %95 : vector<8x32xf32>
    %104 = arith.mulf %103, %101 : vector<8x32xf32>
    %105 = arith.mulf %95, %76 : vector<8x32xf32>
    %106 = arith.addf %104, %105 : vector<8x32xf32>
    %c0_39 = arith.constant 0 : index
    %107 = arith.index_cast %c2_i32 : i32 to index
    %c0_40 = arith.constant 0 : index
    %c0_41 = arith.constant 0 : index
    %108 = vector.load %arg8[%c0_39, %107, %c0_40, %c0_41] : memref<1x8x8x32xf32, #tpu.memory_space<vmem>>, vector<1x1x8x32xf32>
    %109 = vector.shape_cast %108 : vector<1x1x8x32xf32> to vector<8x32xf32>
    %110 = vector.shape_cast %106 : vector<8x32xf32> to vector<1x1x8x32xf32>
    tpu.vector_store %arg8[%c0_39, %107, %c0_40, %c0_41], %110 {strides = array<i32>} : memref<1x8x8x32xf32, #tpu.memory_space<vmem>>, vector<1x1x8x32xf32>,
    %c3_i32 = arith.constant 3 : i32
    %c8_i32_42 = arith.constant 8 : i32
    %111 = arith.muli %c3_i32, %c8_i32_42 : i32
    %112 = tpu.assume_multiple %111, 8 : i32
    %113 = arith.index_cast %112 : i32 to index
    %c0_43 = arith.constant 0 : index
    %114 = vector.load %arg10[%113, %c0_43] : memref<64x96xf32, #tpu.memory_space<vmem>>, vector<8x96xf32>
    %cst_44 = arith.constant dense<0.000000e+00> : vector<8x96xf32>
    %115 = tpu.matmul %106, %16, %cst_44 {dimension_numbers = #tpu.dot_dimension_numbers<[1], [0], [0], [1], [0, 0, 1, 1], [], []>} : vector<8x32xf32>, vector<32x96xf32>, vector<8x96xf32> -> vector<8x96xf32>
    %116 = vector.extract_strided_slice %114 {offsets = [0, 0], sizes = [8, 64], strides = [1, 1]} : vector<8x96xf32> to vector<8x64xf32>
    %117 = vector.extract_strided_slice %115 {offsets = [0, 0], sizes = [8, 64], strides = [1, 1]} : vector<8x96xf32> to vector<8x64xf32>
    %118 = arith.addf %116, %117 : vector<8x64xf32>
    %119 = arith.negf %118 : vector<8x64xf32>
    %120 = math.exp %119 : vector<8x64xf32>
    %cst_45 = arith.constant 1.000000e+00 : f32
    %121 = vector.broadcast %cst_45 : f32 to vector<8x64xf32>
    %122 = arith.addf %121, %120 : vector<8x64xf32>
    %123 = arith.divf %121, %122 : vector<8x64xf32>
    %124 = vector.extract_strided_slice %123 {offsets = [0, 0], sizes = [8, 32], strides = [1, 1]} : vector<8x64xf32> to vector<8x32xf32>
    %125 = vector.extract_strided_slice %123 {offsets = [0, 32], sizes = [8, 32], strides = [1, 1]} : vector<8x64xf32> to vector<8x32xf32>
    %126 = vector.extract_strided_slice %114 {offsets = [0, 64], sizes = [8, 32], strides = [1, 1]} : vector<8x96xf32> to vector<8x32xf32>
    %127 = vector.extract_strided_slice %115 {offsets = [0, 64], sizes = [8, 32], strides = [1, 1]} : vector<8x96xf32> to vector<8x32xf32>
    %128 = arith.addf %127, %19 : vector<8x32xf32>
    %129 = arith.mulf %124, %128 : vector<8x32xf32>
    %130 = arith.addf %126, %129 : vector<8x32xf32>
    %131 = math.tanh %130 : vector<8x32xf32>
    %cst_46 = arith.constant 1.000000e+00 : f32
    %132 = vector.broadcast %cst_46 : f32 to vector<8x32xf32>
    %133 = arith.subf %132, %125 : vector<8x32xf32>
    %134 = arith.mulf %133, %131 : vector<8x32xf32>
    %135 = arith.mulf %125, %106 : vector<8x32xf32>
    %136 = arith.addf %134, %135 : vector<8x32xf32>
    %c0_47 = arith.constant 0 : index
    %137 = arith.index_cast %c3_i32 : i32 to index
    %c0_48 = arith.constant 0 : index
    %c0_49 = arith.constant 0 : index
    %138 = vector.load %arg8[%c0_47, %137, %c0_48, %c0_49] : memref<1x8x8x32xf32, #tpu.memory_space<vmem>>, vector<1x1x8x32xf32>
    %139 = vector.shape_cast %138 : vector<1x1x8x32xf32> to vector<8x32xf32>
    %140 = vector.shape_cast %136 : vector<8x32xf32> to vector<1x1x8x32xf32>
    tpu.vector_store %arg8[%c0_47, %137, %c0_48, %c0_49], %140 {strides = array<i32>} : memref<1x8x8x32xf32, #tpu.memory_space<vmem>>, vector<1x1x8x32xf32>,
    %c4_i32 = arith.constant 4 : i32
    %c8_i32_50 = arith.constant 8 : i32
    %141 = arith.muli %c4_i32, %c8_i32_50 : i32
    %142 = tpu.assume_multiple %141, 8 : i32
    %143 = arith.index_cast %142 : i32 to index
    %c0_51 = arith.constant 0 : index
    %144 = vector.load %arg10[%143, %c0_51] : memref<64x96xf32, #tpu.memory_space<vmem>>, vector<8x96xf32>
    %cst_52 = arith.constant dense<0.000000e+00> : vector<8x96xf32>
    %145 = tpu.matmul %136, %16, %cst_52 {dimension_numbers = #tpu.dot_dimension_numbers<[1], [0], [0], [1], [0, 0, 1, 1], [], []>} : vector<8x32xf32>, vector<32x96xf32>, vector<8x96xf32> -> vector<8x96xf32>
    %146 = vector.extract_strided_slice %144 {offsets = [0, 0], sizes = [8, 64], strides = [1, 1]} : vector<8x96xf32> to vector<8x64xf32>
    %147 = vector.extract_strided_slice %145 {offsets = [0, 0], sizes = [8, 64], strides = [1, 1]} : vector<8x96xf32> to vector<8x64xf32>
    %148 = arith.addf %146, %147 : vector<8x64xf32>
    %149 = arith.negf %148 : vector<8x64xf32>
    %150 = math.exp %149 : vector<8x64xf32>
    %cst_53 = arith.constant 1.000000e+00 : f32
    %151 = vector.broadcast %cst_53 : f32 to vector<8x64xf32>
    %152 = arith.addf %151, %150 : vector<8x64xf32>
    %153 = arith.divf %151, %152 : vector<8x64xf32>
    %154 = vector.extract_strided_slice %153 {offsets = [0, 0], sizes = [8, 32], strides = [1, 1]} : vector<8x64xf32> to vector<8x32xf32>
    %155 = vector.extract_strided_slice %153 {offsets = [0, 32], sizes = [8, 32], strides = [1, 1]} : vector<8x64xf32> to vector<8x32xf32>
    %156 = vector.extract_strided_slice %144 {offsets = [0, 64], sizes = [8, 32], strides = [1, 1]} : vector<8x96xf32> to vector<8x32xf32>
    %157 = vector.extract_strided_slice %145 {offsets = [0, 64], sizes = [8, 32], strides = [1, 1]} : vector<8x96xf32> to vector<8x32xf32>
    %158 = arith.addf %157, %19 : vector<8x32xf32>
    %159 = arith.mulf %154, %158 : vector<8x32xf32>
    %160 = arith.addf %156, %159 : vector<8x32xf32>
    %161 = math.tanh %160 : vector<8x32xf32>
    %cst_54 = arith.constant 1.000000e+00 : f32
    %162 = vector.broadcast %cst_54 : f32 to vector<8x32xf32>
    %163 = arith.subf %162, %155 : vector<8x32xf32>
    %164 = arith.mulf %163, %161 : vector<8x32xf32>
    %165 = arith.mulf %155, %136 : vector<8x32xf32>
    %166 = arith.addf %164, %165 : vector<8x32xf32>
    %c0_55 = arith.constant 0 : index
    %167 = arith.index_cast %c4_i32 : i32 to index
    %c0_56 = arith.constant 0 : index
    %c0_57 = arith.constant 0 : index
    %168 = vector.load %arg8[%c0_55, %167, %c0_56, %c0_57] : memref<1x8x8x32xf32, #tpu.memory_space<vmem>>, vector<1x1x8x32xf32>
    %169 = vector.shape_cast %168 : vector<1x1x8x32xf32> to vector<8x32xf32>
    %170 = vector.shape_cast %166 : vector<8x32xf32> to vector<1x1x8x32xf32>
    tpu.vector_store %arg8[%c0_55, %167, %c0_56, %c0_57], %170 {strides = array<i32>} : memref<1x8x8x32xf32, #tpu.memory_space<vmem>>, vector<1x1x8x32xf32>,
    %c5_i32 = arith.constant 5 : i32
    %c8_i32_58 = arith.constant 8 : i32
    %171 = arith.muli %c5_i32, %c8_i32_58 : i32
    %172 = tpu.assume_multiple %171, 8 : i32
    %173 = arith.index_cast %172 : i32 to index
    %c0_59 = arith.constant 0 : index
    %174 = vector.load %arg10[%173, %c0_59] : memref<64x96xf32, #tpu.memory_space<vmem>>, vector<8x96xf32>
    %cst_60 = arith.constant dense<0.000000e+00> : vector<8x96xf32>
    %175 = tpu.matmul %166, %16, %cst_60 {dimension_numbers = #tpu.dot_dimension_numbers<[1], [0], [0], [1], [0, 0, 1, 1], [], []>} : vector<8x32xf32>, vector<32x96xf32>, vector<8x96xf32> -> vector<8x96xf32>
    %176 = vector.extract_strided_slice %174 {offsets = [0, 0], sizes = [8, 64], strides = [1, 1]} : vector<8x96xf32> to vector<8x64xf32>
    %177 = vector.extract_strided_slice %175 {offsets = [0, 0], sizes = [8, 64], strides = [1, 1]} : vector<8x96xf32> to vector<8x64xf32>
    %178 = arith.addf %176, %177 : vector<8x64xf32>
    %179 = arith.negf %178 : vector<8x64xf32>
    %180 = math.exp %179 : vector<8x64xf32>
    %cst_61 = arith.constant 1.000000e+00 : f32
    %181 = vector.broadcast %cst_61 : f32 to vector<8x64xf32>
    %182 = arith.addf %181, %180 : vector<8x64xf32>
    %183 = arith.divf %181, %182 : vector<8x64xf32>
    %184 = vector.extract_strided_slice %183 {offsets = [0, 0], sizes = [8, 32], strides = [1, 1]} : vector<8x64xf32> to vector<8x32xf32>
    %185 = vector.extract_strided_slice %183 {offsets = [0, 32], sizes = [8, 32], strides = [1, 1]} : vector<8x64xf32> to vector<8x32xf32>
    %186 = vector.extract_strided_slice %174 {offsets = [0, 64], sizes = [8, 32], strides = [1, 1]} : vector<8x96xf32> to vector<8x32xf32>
    %187 = vector.extract_strided_slice %175 {offsets = [0, 64], sizes = [8, 32], strides = [1, 1]} : vector<8x96xf32> to vector<8x32xf32>
    %188 = arith.addf %187, %19 : vector<8x32xf32>
    %189 = arith.mulf %184, %188 : vector<8x32xf32>
    %190 = arith.addf %186, %189 : vector<8x32xf32>
    %191 = math.tanh %190 : vector<8x32xf32>
    %cst_62 = arith.constant 1.000000e+00 : f32
    %192 = vector.broadcast %cst_62 : f32 to vector<8x32xf32>
    %193 = arith.subf %192, %185 : vector<8x32xf32>
    %194 = arith.mulf %193, %191 : vector<8x32xf32>
    %195 = arith.mulf %185, %166 : vector<8x32xf32>
    %196 = arith.addf %194, %195 : vector<8x32xf32>
    %c0_63 = arith.constant 0 : index
    %197 = arith.index_cast %c5_i32 : i32 to index
    %c0_64 = arith.constant 0 : index
    %c0_65 = arith.constant 0 : index
    %198 = vector.load %arg8[%c0_63, %197, %c0_64, %c0_65] : memref<1x8x8x32xf32, #tpu.memory_space<vmem>>, vector<1x1x8x32xf32>
    %199 = vector.shape_cast %198 : vector<1x1x8x32xf32> to vector<8x32xf32>
    %200 = vector.shape_cast %196 : vector<8x32xf32> to vector<1x1x8x32xf32>
    tpu.vector_store %arg8[%c0_63, %197, %c0_64, %c0_65], %200 {strides = array<i32>} : memref<1x8x8x32xf32, #tpu.memory_space<vmem>>, vector<1x1x8x32xf32>,
    %c6_i32 = arith.constant 6 : i32
    %c8_i32_66 = arith.constant 8 : i32
    %201 = arith.muli %c6_i32, %c8_i32_66 : i32
    %202 = tpu.assume_multiple %201, 8 : i32
    %203 = arith.index_cast %202 : i32 to index
    %c0_67 = arith.constant 0 : index
    %204 = vector.load %arg10[%203, %c0_67] : memref<64x96xf32, #tpu.memory_space<vmem>>, vector<8x96xf32>
    %cst_68 = arith.constant dense<0.000000e+00> : vector<8x96xf32>
    %205 = tpu.matmul %196, %16, %cst_68 {dimension_numbers = #tpu.dot_dimension_numbers<[1], [0], [0], [1], [0, 0, 1, 1], [], []>} : vector<8x32xf32>, vector<32x96xf32>, vector<8x96xf32> -> vector<8x96xf32>
    %206 = vector.extract_strided_slice %204 {offsets = [0, 0], sizes = [8, 64], strides = [1, 1]} : vector<8x96xf32> to vector<8x64xf32>
    %207 = vector.extract_strided_slice %205 {offsets = [0, 0], sizes = [8, 64], strides = [1, 1]} : vector<8x96xf32> to vector<8x64xf32>
    %208 = arith.addf %206, %207 : vector<8x64xf32>
    %209 = arith.negf %208 : vector<8x64xf32>
    %210 = math.exp %209 : vector<8x64xf32>
    %cst_69 = arith.constant 1.000000e+00 : f32
    %211 = vector.broadcast %cst_69 : f32 to vector<8x64xf32>
    %212 = arith.addf %211, %210 : vector<8x64xf32>
    %213 = arith.divf %211, %212 : vector<8x64xf32>
    %214 = vector.extract_strided_slice %213 {offsets = [0, 0], sizes = [8, 32], strides = [1, 1]} : vector<8x64xf32> to vector<8x32xf32>
    %215 = vector.extract_strided_slice %213 {offsets = [0, 32], sizes = [8, 32], strides = [1, 1]} : vector<8x64xf32> to vector<8x32xf32>
    %216 = vector.extract_strided_slice %204 {offsets = [0, 64], sizes = [8, 32], strides = [1, 1]} : vector<8x96xf32> to vector<8x32xf32>
    %217 = vector.extract_strided_slice %205 {offsets = [0, 64], sizes = [8, 32], strides = [1, 1]} : vector<8x96xf32> to vector<8x32xf32>
    %218 = arith.addf %217, %19 : vector<8x32xf32>
    %219 = arith.mulf %214, %218 : vector<8x32xf32>
    %220 = arith.addf %216, %219 : vector<8x32xf32>
    %221 = math.tanh %220 : vector<8x32xf32>
    %cst_70 = arith.constant 1.000000e+00 : f32
    %222 = vector.broadcast %cst_70 : f32 to vector<8x32xf32>
    %223 = arith.subf %222, %215 : vector<8x32xf32>
    %224 = arith.mulf %223, %221 : vector<8x32xf32>
    %225 = arith.mulf %215, %196 : vector<8x32xf32>
    %226 = arith.addf %224, %225 : vector<8x32xf32>
    %c0_71 = arith.constant 0 : index
    %227 = arith.index_cast %c6_i32 : i32 to index
    %c0_72 = arith.constant 0 : index
    %c0_73 = arith.constant 0 : index
    %228 = vector.load %arg8[%c0_71, %227, %c0_72, %c0_73] : memref<1x8x8x32xf32, #tpu.memory_space<vmem>>, vector<1x1x8x32xf32>
    %229 = vector.shape_cast %228 : vector<1x1x8x32xf32> to vector<8x32xf32>
    %230 = vector.shape_cast %226 : vector<8x32xf32> to vector<1x1x8x32xf32>
    tpu.vector_store %arg8[%c0_71, %227, %c0_72, %c0_73], %230 {strides = array<i32>} : memref<1x8x8x32xf32, #tpu.memory_space<vmem>>, vector<1x1x8x32xf32>,
    %c7_i32 = arith.constant 7 : i32
    %c8_i32_74 = arith.constant 8 : i32
    %231 = arith.muli %c7_i32, %c8_i32_74 : i32
    %232 = tpu.assume_multiple %231, 8 : i32
    %233 = arith.index_cast %232 : i32 to index
    %c0_75 = arith.constant 0 : index
    %234 = vector.load %arg10[%233, %c0_75] : memref<64x96xf32, #tpu.memory_space<vmem>>, vector<8x96xf32>
    %cst_76 = arith.constant dense<0.000000e+00> : vector<8x96xf32>
    %235 = tpu.matmul %226, %16, %cst_76 {dimension_numbers = #tpu.dot_dimension_numbers<[1], [0], [0], [1], [0, 0, 1, 1], [], []>} : vector<8x32xf32>, vector<32x96xf32>, vector<8x96xf32> -> vector<8x96xf32>
    %236 = vector.extract_strided_slice %234 {offsets = [0, 0], sizes = [8, 64], strides = [1, 1]} : vector<8x96xf32> to vector<8x64xf32>
    %237 = vector.extract_strided_slice %235 {offsets = [0, 0], sizes = [8, 64], strides = [1, 1]} : vector<8x96xf32> to vector<8x64xf32>
    %238 = arith.addf %236, %237 : vector<8x64xf32>
    %239 = arith.negf %238 : vector<8x64xf32>
    %240 = math.exp %239 : vector<8x64xf32>
    %cst_77 = arith.constant 1.000000e+00 : f32
    %241 = vector.broadcast %cst_77 : f32 to vector<8x64xf32>
    %242 = arith.addf %241, %240 : vector<8x64xf32>
    %243 = arith.divf %241, %242 : vector<8x64xf32>
    %244 = vector.extract_strided_slice %243 {offsets = [0, 0], sizes = [8, 32], strides = [1, 1]} : vector<8x64xf32> to vector<8x32xf32>
    %245 = vector.extract_strided_slice %243 {offsets = [0, 32], sizes = [8, 32], strides = [1, 1]} : vector<8x64xf32> to vector<8x32xf32>
    %246 = vector.extract_strided_slice %234 {offsets = [0, 64], sizes = [8, 32], strides = [1, 1]} : vector<8x96xf32> to vector<8x32xf32>
    %247 = vector.extract_strided_slice %235 {offsets = [0, 64], sizes = [8, 32], strides = [1, 1]} : vector<8x96xf32> to vector<8x32xf32>
    %248 = arith.addf %247, %19 : vector<8x32xf32>
    %249 = arith.mulf %244, %248 : vector<8x32xf32>
    %250 = arith.addf %246, %249 : vector<8x32xf32>
    %251 = math.tanh %250 : vector<8x32xf32>
    %cst_78 = arith.constant 1.000000e+00 : f32
    %252 = vector.broadcast %cst_78 : f32 to vector<8x32xf32>
    %253 = arith.subf %252, %245 : vector<8x32xf32>
    %254 = arith.mulf %253, %251 : vector<8x32xf32>
    %255 = arith.mulf %245, %226 : vector<8x32xf32>
    %256 = arith.addf %254, %255 : vector<8x32xf32>
    %c0_79 = arith.constant 0 : index
    %257 = arith.index_cast %c7_i32 : i32 to index
    %c0_80 = arith.constant 0 : index
    %c0_81 = arith.constant 0 : index
    %258 = vector.load %arg8[%c0_79, %257, %c0_80, %c0_81] : memref<1x8x8x32xf32, #tpu.memory_space<vmem>>, vector<1x1x8x32xf32>
    %259 = vector.shape_cast %258 : vector<1x1x8x32xf32> to vector<8x32xf32>
    %260 = vector.shape_cast %256 : vector<8x32xf32> to vector<1x1x8x32xf32>
    tpu.vector_store %arg8[%c0_79, %257, %c0_80, %c0_81], %260 {strides = array<i32>} : memref<1x8x8x32xf32, #tpu.memory_space<vmem>>, vector<1x1x8x32xf32>,
    %c8_i32_82 = arith.constant 8 : i32
    %c0_83 = arith.constant 0 : index
    %c0_84 = arith.constant 0 : index
    %c0_85 = arith.constant 0 : index
    %261 = vector.load %arg9[%c0_83, %c0_84, %c0_85] : memref<1x8x32xf32, #tpu.memory_space<vmem>>, vector<1x8x32xf32>
    %262 = vector.shape_cast %261 : vector<1x8x32xf32> to vector<8x32xf32>
    %263 = vector.shape_cast %256 : vector<8x32xf32> to vector<1x8x32xf32>
    tpu.vector_store %arg9[%c0_83, %c0_84, %c0_85], %263 {strides = array<i32>} : memref<1x8x32xf32, #tpu.memory_space<vmem>>, vector<1x8x32xf32>,
    return
  }
  func.func @transform_0(%arg0: i32) -> (i32, i32, i32) {
    %c0_i32 = arith.constant 0 : i32
    %c0_i32_0 = arith.constant 0 : i32
    %c0_i32_1 = arith.constant 0 : i32
    return %arg0, %c0_i32, %c0_i32_0 : i32, i32, i32
  }
  func.func @transform_1(%arg0: i32) -> (i32, i32) {
    %c0_i32 = arith.constant 0 : i32
    %c0_i32_0 = arith.constant 0 : i32
    %c0_i32_1 = arith.constant 0 : i32
    return %c0_i32, %c0_i32_0 : i32, i32
  }
  func.func @transform_2(%arg0: i32) -> (i32, i32) {
    %c0_i32 = arith.constant 0 : i32
    %c0_i32_0 = arith.constant 0 : i32
    %c0_i32_1 = arith.constant 0 : i32
    return %c0_i32, %c0_i32_0 : i32, i32
  }
  func.func @transform_3(%arg0: i32) -> (i32, i32) {
    %c0_i32 = arith.constant 0 : i32
    %c0_i32_0 = arith.constant 0 : i32
    %c0_i32_1 = arith.constant 0 : i32
    return %c0_i32, %c0_i32_0 : i32, i32
  }
  func.func @transform_4(%arg0: i32) -> (i32, i32) {
    %c0_i32 = arith.constant 0 : i32
    %c0_i32_0 = arith.constant 0 : i32
    %c0_i32_1 = arith.constant 0 : i32
    return %c0_i32, %c0_i32_0 : i32, i32
  }
  func.func @transform_5(%arg0: i32) -> (i32, i32) {
    %c0_i32 = arith.constant 0 : i32
    %c0_i32_0 = arith.constant 0 : i32
    %c0_i32_1 = arith.constant 0 : i32
    return %c0_i32, %c0_i32_0 : i32, i32
  }
  func.func @transform_6(%arg0: i32) -> (i32, i32) {
    %c0_i32 = arith.constant 0 : i32
    %c0_i32_0 = arith.constant 0 : i32
    %c0_i32_1 = arith.constant 0 : i32
    return %c0_i32, %c0_i32_0 : i32, i32
  }
  func.func @transform_7(%arg0: i32) -> (i32, i32, i32, i32) {
    %c0_i32 = arith.constant 0 : i32
    %c0_i32_0 = arith.constant 0 : i32
    %c0_i32_1 = arith.constant 0 : i32
    %c0_i32_2 = arith.constant 0 : i32
    return %arg0, %c0_i32, %c0_i32_0, %c0_i32_1 : i32, i32, i32, i32
  }
  func.func @transform_8(%arg0: i32) -> (i32, i32, i32) {
    %c0_i32 = arith.constant 0 : i32
    %c0_i32_0 = arith.constant 0 : i32
    %c0_i32_1 = arith.constant 0 : i32
    return %arg0, %c0_i32, %c0_i32_0 : i32, i32, i32
  }
}

</mosaic_0001>

<llo_original>
// kernel: tpu_custom_call.1
$region0: #{tpu_custom_call.1}
  #allocation0 [shape = 'u32[]', space=smem, size = 0x4, offset = 0x4, fixed_abs, tag = 'smem constant byte address 0x4 - core index']
  #allocation1 [shape = 'u32[72,128]{1,0:T(1,128)}', space=vmem, size = 0x9000, scoped, tag = 'internal scratch']
  #allocation2 [shape = 'f32[64,96]{1,0:T(8,128)}', space=vmem, size = 0x8000, scoped, tag = 'scratch operand']
  %s0 = inlined_call_operand.vmem [shape: f32[1,64,16], index: 0, kind: input, shape index: {}]
  %s1 = inlined_call_operand.vmem [shape: f32[16,32], index: 1, kind: input, shape index: {}]
  %s2 = inlined_call_operand.vmem [shape: f32[1,32], index: 2, kind: input, shape index: {}]
  %s3 = inlined_call_operand.vmem [shape: f32[32,96], index: 3, kind: input, shape index: {}]
  %s4 = inlined_call_operand.vmem [shape: f32[1,96], index: 4, kind: input, shape index: {}]
  %s5 = inlined_call_operand.vmem [shape: f32[32,96], index: 5, kind: input, shape index: {}]
  %s6 = inlined_call_operand.vmem [shape: f32[1,32], index: 6, kind: input, shape index: {}]
  %s7 = inlined_call_operand.hbm [shape: f32[1,8,8,32], index: 7, kind: output, shape index: {0}]
  %s8 = inlined_call_operand.hbm [shape: f32[1,8,32], index: 8, kind: output, shape index: {1}]
  %9 = xla_tuple %s7, %s8
  %s10 = sld [smem:[#allocation0]]
  $region46: #{tpu_custom_call.1} parent=0
    _
  %s12 = ssub.s32 1, %s10
  %s13 = scalar_select 0, %s12, %s10
  $region1: #{tpu_custom_call.1} parent=0
    #allocation3 [shape = 'u8[32768]{0}', space=vmem, size = 0x8000, scoped, tag = 'output window, operand 0, single buffered']
    #allocation4 [shape = 's32[1]{0}', space=sflag, size = 0x4, scoped, tag = 'scoped memory for tpu_custom_call.1']
    #allocation5 [shape = 'u8[4096]{0}', space=vmem, size = 0x1000, scoped, tag = 'output window, operand 1, single buffered']
    #allocation6 [shape = 's32[1]{0}', space=sflag, size = 0x4, scoped, tag = 'scoped memory for tpu_custom_call.1']
    %14 = vsyncpa [#allocation4], 0
    %15 = vsyncpa [#allocation6], 0
    // Predicated region
    $region2: #{tpu_custom_call.1} parent=1 // pred_check
      _
    $region3: #{tpu_custom_call.1} parent=1 // pred_check_branch
      %17 = sbr.rel (0) target = $region5
    $region4: #{tpu_custom_call.1} parent=1 // pred_region
      _
    $region5: #{tpu_custom_call.1} parent=1 // pred_fallthru
      _
    // Predicated region
    $region6: #{tpu_custom_call.1} parent=1 // pred_check
      _
    $region7: #{tpu_custom_call.1} parent=1 // pred_check_branch
      %19 = sbr.rel (0) target = $region9
    $region8: #{tpu_custom_call.1} parent=1 // pred_region
      _
    $region9: #{tpu_custom_call.1} parent=1 // pred_fallthru
      _
    // Predicated region
    $region10: #{tpu_custom_call.1} parent=1 // pred_check
      _
    $region11: #{tpu_custom_call.1} parent=1 // pred_check_branch
      %21 = sbr.rel (0) target = $region13
    $region12: #{tpu_custom_call.1} parent=1 // pred_region
      _
    $region13: #{tpu_custom_call.1} parent=1 // pred_fallthru
      _
    // Predicated region
    $region14: #{tpu_custom_call.1} parent=1 // pred_check
      _
    $region15: #{tpu_custom_call.1} parent=1 // pred_check_branch
      %23 = sbr.rel (0) target = $region17
    $region16: #{tpu_custom_call.1} parent=1 // pred_region
      _
    $region17: #{tpu_custom_call.1} parent=1 // pred_fallthru
      _
    // Predicated region
    $region18: #{tpu_custom_call.1} parent=1 // pred_check
      _
    $region19: #{tpu_custom_call.1} parent=1 // pred_check_branch
      %25 = sbr.rel (0) target = $region21
    $region20: #{tpu_custom_call.1} parent=1 // pred_region
      _
    $region21: #{tpu_custom_call.1} parent=1 // pred_fallthru
      _
    // Predicated region
    $region22: #{tpu_custom_call.1} parent=1 // pred_check
      _
    $region23: #{tpu_custom_call.1} parent=1 // pred_check_branch
      %27 = sbr.rel (0) target = $region25
    $region24: #{tpu_custom_call.1} parent=1 // pred_region
      _
    $region25: #{tpu_custom_call.1} parent=1 // pred_fallthru
      _
    // Predicated region
    $region26: #{tpu_custom_call.1} parent=1 // pred_check
      _
    $region27: #{tpu_custom_call.1} parent=1 // pred_check_branch
      %29 = sbr.rel (0) target = $region29
    $region28: #{tpu_custom_call.1} parent=1 // pred_region
      _
    $region29: #{tpu_custom_call.1} parent=1 // pred_fallthru
      _
    %v30 = vld [vmem:[%s0] sm:$0xff]
    %v31 = vld [vmem:[%s0 + $0x8] sm:$0xff]
    %v32 = vld [vmem:[%s0 + $0x10] sm:$0xff]
    %v33 = vld [vmem:[%s0 + $0x18] sm:$0xff]
    %v34 = vld [vmem:[%s0 + $0x20] sm:$0xff]
    %v35 = vld [vmem:[%s0 + $0x28] sm:$0xff]
    %v36 = vld [vmem:[%s0 + $0x30] sm:$0xff]
    %v37 = vld [vmem:[%s0 + $0x38] sm:$0xff]
    %v38 = vld [vmem:[%s1] sm:$0xff]
    %v39 = vld [vmem:[%s1 + $0x8] sm:$0xff]
    %v40 = vld [vmem:[%s2] sm:$0x1]
    %v42 = vperm.slane %v40, 0
    %vm44 = vcmask 130048
    %v46 = vsel %vm44, %v30, 0
    %v49 = vsel %vm44, %v31, 0
    %v52 = vsel %vm44, %v32, 0
    %v55 = vsel %vm44, %v33, 0
    %v58 = vsel %vm44, %v34, 0
    %v61 = vsel %vm44, %v35, 0
    %v64 = vsel %vm44, %v36, 0
    %v67 = vsel %vm44, %v37, 0
    %69 = vmatpush.msra.mxu0 0.0
    %70 = vmatpush.msra.mxu0 0.0
    %71 = vmatpush.msra.mxu0 0.0
    %72 = vmatpush.msra.mxu0 0.0
    %73 = vmatpush.msra.mxu0 0.0
    %74 = vmatpush.msra.mxu0 0.0
    %75 = vmatpush.msra.mxu0 0.0
    %76 = vmatpush.msra.mxu0 0.0
    %77 = vmatpush.msra.mxu0 0.0
    %78 = vmatpush.msra.mxu0 0.0
    %79 = vmatpush.msra.mxu0 0.0
    %80 = vmatpush.msra.mxu0 0.0
    %81 = vmatpush.msra.mxu0 0.0
    %82 = vmatpush.msra.mxu0 0.0
    %83 = vmatpush.msra.mxu0 %v39
    %84 = vmatpush.msra.mxu0 %v38
    %85 = vmatmul.f32.gmra.mxu0 %v46
    %v86 = vpop.f32.mrf.mxu0
    %v87 = vadd.f32 %v42, %v86
    %88 = vmatmul.f32.gmra.mxu0 %v49
    %v89 = vpop.f32.mrf.mxu0
    %v90 = vadd.f32 %v42, %v89
    %91 = vmatmul.f32.gmra.mxu0 %v52
    %v92 = vpop.f32.mrf.mxu0
    %v93 = vadd.f32 %v42, %v92
    %94 = vmatmul.f32.gmra.mxu0 %v55
    %v95 = vpop.f32.mrf.mxu0
    %v96 = vadd.f32 %v42, %v95
    %97 = vmatmul.f32.gmra.mxu0 %v58
    %v98 = vpop.f32.mrf.mxu0
    %v99 = vadd.f32 %v42, %v98
    %100 = vmatmul.f32.gmra.mxu0 %v61
    %v101 = vpop.f32.mrf.mxu0
    %v102 = vadd.f32 %v42, %v101
    %103 = vmatmul.f32.gmra.mxu0 %v64
    %v104 = vpop.f32.mrf.mxu0
    %v105 = vadd.f32 %v42, %v104
    %106 = vmatmul.f32.gmra.mxu0 %v67
    %v107 = vpop.f32.mrf.mxu0
    %v108 = vadd.f32 %v42, %v107
    %109 = vdwg.mxu0
    %v110 = vmul.f32 %v87, 0.2
    %v111 = vmul.f32 %v90, 0.2
    %v112 = vmul.f32 %v93, 0.2
    %v113 = vmul.f32 %v96, 0.2
    %v114 = vmul.f32 %v99, 0.2
    %v115 = vmul.f32 %v102, 0.2
    %v116 = vmul.f32 %v105, 0.2
    %v117 = vmul.f32 %v108, 0.2
    %v118 = vmax.f32 %v87, %v110
    %v119 = vmax.f32 %v90, %v111
    %v120 = vmax.f32 %v93, %v112
    %v121 = vmax.f32 %v96, %v113
    %v122 = vmax.f32 %v99, %v114
    %v123 = vmax.f32 %v102, %v115
    %v124 = vmax.f32 %v105, %v116
    %v125 = vmax.f32 %v108, %v117
    %v126 = vld [vmem:[%s3] sm:$0xff]
    %v127 = vld [vmem:[%s3 + $0x8] sm:$0xff]
    %v128 = vld [vmem:[%s3 + $0x10] sm:$0xff]
    %v129 = vld [vmem:[%s3 + $0x18] sm:$0xff]
    %v130 = vld [vmem:[%s4] sm:$0x1]
    %v132 = vperm.slane %v130, 0
    %vm134 = vcmask 261120
    %v136 = vsel %vm134, %v118, 0
    %v139 = vsel %vm134, %v119, 0
    %v142 = vsel %vm134, %v120, 0
    %v145 = vsel %vm134, %v121, 0
    %v148 = vsel %vm134, %v122, 0
    %v151 = vsel %vm134, %v123, 0
    %v154 = vsel %vm134, %v124, 0
    %v157 = vsel %vm134, %v125, 0
    %159 = vmatpush.msra.mxu0 0.0
    %160 = vmatpush.msra.mxu0 0.0
    %161 = vmatpush.msra.mxu0 0.0
    %162 = vmatpush.msra.mxu0 0.0
    %163 = vmatpush.msra.mxu0 0.0
    %164 = vmatpush.msra.mxu0 0.0
    %165 = vmatpush.msra.mxu0 0.0
    %166 = vmatpush.msra.mxu0 0.0
    %167 = vmatpush.msra.mxu0 0.0
    %168 = vmatpush.msra.mxu0 0.0
    %169 = vmatpush.msra.mxu0 0.0
    %170 = vmatpush.msra.mxu0 0.0
    %171 = vmatpush.msra.mxu0 %v129
    %172 = vmatpush.msra.mxu0 %v128
    %173 = vmatpush.msra.mxu0 %v127
    %174 = vmatpush.msra.mxu0 %v126
    %175 = vmatmul.f32.gmra.mxu0 %v136
    %v176 = vpop.f32.mrf.mxu0
    %v177 = vadd.f32 %v132, %v176
    %178 = vmatmul.f32.gmra.mxu0 %v139
    %v179 = vpop.f32.mrf.mxu0
    %v180 = vadd.f32 %v132, %v179
    %181 = vmatmul.f32.gmra.mxu0 %v142
    %v182 = vpop.f32.mrf.mxu0
    %v183 = vadd.f32 %v132, %v182
    %184 = vmatmul.f32.gmra.mxu0 %v145
    %v185 = vpop.f32.mrf.mxu0
    %v186 = vadd.f32 %v132, %v185
    %187 = vmatmul.f32.gmra.mxu0 %v148
    %v188 = vpop.f32.mrf.mxu0
    %v189 = vadd.f32 %v132, %v188
    %190 = vmatmul.f32.gmra.mxu0 %v151
    %v191 = vpop.f32.mrf.mxu0
    %v192 = vadd.f32 %v132, %v191
    %193 = vmatmul.f32.gmra.mxu0 %v154
    %v194 = vpop.f32.mrf.mxu0
    %v195 = vadd.f32 %v132, %v194
    %196 = vmatmul.f32.gmra.mxu0 %v157
    %v197 = vpop.f32.mrf.mxu0
    %v198 = vadd.f32 %v132, %v197
    %199 = vdwg.mxu0
    %vm200 = vcmask 785408
    %201 = vst.msk [vmem:[#allocation2] sm:$0xff] %vm200, %v177
    %202 = vst.msk [vmem:[#allocation2 + $0x8] sm:$0xff] %vm200, %v180
    %203 = vst.msk [vmem:[#allocation2 + $0x10] sm:$0xff] %vm200, %v183
    %204 = vst.msk [vmem:[#allocation2 + $0x18] sm:$0xff] %vm200, %v186
    %205 = vst.msk [vmem:[#allocation2 + $0x20] sm:$0xff] %vm200, %v189
    %206 = vst.msk [vmem:[#allocation2 + $0x28] sm:$0xff] %vm200, %v192
    %207 = vst.msk [vmem:[#allocation2 + $0x30] sm:$0xff] %vm200, %v195
    %208 = vst.msk [vmem:[#allocation2 + $0x38] sm:$0xff] %vm200, %v198
    %v209 = vld [vmem:[%s5] sm:$0xff]
    %v210 = vld [vmem:[%s5 + $0x8] sm:$0xff]
    %v211 = vld [vmem:[%s5 + $0x10] sm:$0xff]
    %v212 = vld [vmem:[%s5 + $0x18] sm:$0xff]
    %v213 = vld [vmem:[%s6] sm:$0x1]
    %v215 = vperm.slane %v213, 0
    %v216 = vld [vmem:[#allocation2] sm:$0xff]
    %v218 = vsel %vm134, 0.0, 0
    %220 = vmatpush.msra.mxu0 0.0
    %221 = vmatpush.msra.mxu0 0.0
    %222 = vmatpush.msra.mxu0 0.0
    %223 = vmatpush.msra.mxu0 0.0
    %224 = vmatpush.msra.mxu0 0.0
    %225 = vmatpush.msra.mxu0 0.0
    %226 = vmatpush.msra.mxu0 0.0
    %227 = vmatpush.msra.mxu0 0.0
    %228 = vmatpush.msra.mxu0 0.0
    %229 = vmatpush.msra.mxu0 0.0
    %230 = vmatpush.msra.mxu0 0.0
    %231 = vmatpush.msra.mxu0 0.0
    %232 = vmatpush.msra.mxu0 %v212
    %233 = vmatpush.msra.mxu0 %v211
    %234 = vmatpush.msra.mxu0 %v210
    %235 = vmatpush.msra.mxu0 %v209
    %236 = vmatmul.f32.gmra.mxu0 %v218
    %v237 = vpop.f32.mrf.mxu0
    %v238 = vadd.f32 0.0, %v237
    %239 = vdwg.mxu0
    %v240 = vadd.f32 %v216, %v238
    %v241 = vxor.u32 %v240, 2147483648
    %v242 = vmul.f32 %v241, 1.442695
    %v243 = vpow.pop %v242
    %v244 = vadd.f32 %v243, 1.0
    %v245 = vrcp.pop %v244
    %v246 = vmul.f32 %v244, %v245
    %v247 = vsub.f32 1.0, %v246
    %v248 = vmul.f32 %v245, %v247
    %v249 = vadd.f32 %v245, %v248
    %vm250 = vweird.f32 %v244
    %vm251 = vweird.f32 %v245
    %vm252 = vmor %vm250, %vm251
    %v253 = vsel %vm252, %v245, %v249
    %v254 = vand.u32 2147483647, %v244
    %vm255 = vcmp.eq.f32.partialorder %v254, 8.507059e+37
    %v256 = vand.u32 %v244, 2147483648
    %v257 = vor.u32 1.1754944e-38, %v256
    %v258 = vsel %vm255, %v257, %v253
    %v259 = vmul.f32 1.0, %v258
    %260 = vrot.lane.b32.xlu0 %v215, 64
    %v261 = vpop.permute.xlu0 %260
    %v263 = vadd.f32 %v238, %v261
    %265 = vrot.lane.b32.xlu0 %v263, 64
    %v266 = vpop.permute.xlu0 %265
    %v268 = vmul.f32 %v259, %v266
    %270 = vrot.lane.b32.xlu0 %v268, 64
    %v271 = vpop.permute.xlu0 %270
    %v273 = vadd.f32 %v216, %v271
    %v274 = vtanh.pop %v273
    %v275 = vsub.f32 1.0, %v259
    %277 = vrot.lane.b32.xlu0 %v274, 96
    %v278 = vpop.permute.xlu0 %277
    %v280 = vmul.f32 %v275, %v278
    %v281 = vmul.f32 %v259, 0.0
    %v282 = vadd.f32 %v280, %v281
    %284 = vrot.lane.b32.xlu0 %v282, 96
    %v285 = vpop.permute.xlu0 %284
    %287 = vst.msk [vmem:[#allocation3] sm:$0xff] %vm134, %v285
    %s288 = scalar_lea.vmem [#allocation2], 8
    %v289 = vld [vmem:[%s288] sm:$0xff]
    %v290 = vsel %vm134, %v285, 0
    %292 = vmatpush.msra.mxu0 0.0
    %293 = vmatpush.msra.mxu0 0.0
    %294 = vmatpush.msra.mxu0 0.0
    %295 = vmatpush.msra.mxu0 0.0
    %296 = vmatpush.msra.mxu0 0.0
    %297 = vmatpush.msra.mxu0 0.0
    %298 = vmatpush.msra.mxu0 0.0
    %299 = vmatpush.msra.mxu0 0.0
    %300 = vmatpush.msra.mxu0 0.0
    %301 = vmatpush.msra.mxu0 0.0
    %302 = vmatpush.msra.mxu0 0.0
    %303 = vmatpush.msra.mxu0 0.0
    %304 = vmatpush.msra.mxu0 %v212
    %305 = vmatpush.msra.mxu0 %v211
    %306 = vmatpush.msra.mxu0 %v210
    %307 = vmatpush.msra.mxu0 %v209
    %308 = vmatmul.f32.gmra.mxu0 %v290
    %v309 = vpop.f32.mrf.mxu0
    %v310 = vadd.f32 0.0, %v309
    %311 = vdwg.mxu0
    %v312 = vadd.f32 %v289, %v310
    %v313 = vxor.u32 %v312, 2147483648
    %v314 = vmul.f32 %v313, 1.442695
    %v315 = vpow.pop %v314
    %v316 = vadd.f32 %v315, 1.0
    %v317 = vrcp.pop %v316
    %v318 = vmul.f32 %v316, %v317
    %v319 = vsub.f32 1.0, %v318
    %v320 = vmul.f32 %v317, %v319
    %v321 = vadd.f32 %v317, %v320
    %vm322 = vweird.f32 %v316
    %vm323 = vweird.f32 %v317
    %vm324 = vmor %vm322, %vm323
    %v325 = vsel %vm324, %v317, %v321
    %v326 = vand.u32 2147483647, %v316
    %vm327 = vcmp.eq.f32.partialorder %v326, 8.507059e+37
    %v328 = vand.u32 %v316, 2147483648
    %v329 = vor.u32 1.1754944e-38, %v328
    %v330 = vsel %vm327, %v329, %v325
    %v331 = vmul.f32 1.0, %v330
    %v332 = vadd.f32 %v310, %v261
    %334 = vrot.lane.b32.xlu0 %v332, 64
    %v335 = vpop.permute.xlu0 %334
    %v337 = vmul.f32 %v331, %v335
    %339 = vrot.lane.b32.xlu0 %v337, 64
    %v340 = vpop.permute.xlu0 %339
    %v342 = vadd.f32 %v289, %v340
    %v343 = vtanh.pop %v342
    %v344 = vsub.f32 1.0, %v331
    %346 = vrot.lane.b32.xlu0 %v343, 96
    %v347 = vpop.permute.xlu0 %346
    %v349 = vmul.f32 %v344, %v347
    %v350 = vmul.f32 %v331, %v282
    %v351 = vadd.f32 %v349, %v350
    %353 = vrot.lane.b32.xlu0 %v351, 96
    %v354 = vpop.permute.xlu0 %353
    %s356 = scalar_lea.vmem [#allocation3], 8
    %357 = vst.msk [vmem:[%s356] sm:$0xff] %vm134, %v354
    %s358 = scalar_lea.vmem [#allocation2], 16
    %v359 = vld [vmem:[%s358] sm:$0xff]
    %v360 = vsel %vm134, %v354, 0
    %362 = vmatpush.msra.mxu0 0.0
    %363 = vmatpush.msra.mxu0 0.0
    %364 = vmatpush.msra.mxu0 0.0
    %365 = vmatpush.msra.mxu0 0.0
    %366 = vmatpush.msra.mxu0 0.0
    %367 = vmatpush.msra.mxu0 0.0
    %368 = vmatpush.msra.mxu0 0.0
    %369 = vmatpush.msra.mxu0 0.0
    %370 = vmatpush.msra.mxu0 0.0
    %371 = vmatpush.msra.mxu0 0.0
    %372 = vmatpush.msra.mxu0 0.0
    %373 = vmatpush.msra.mxu0 0.0
    %374 = vmatpush.msra.mxu0 %v212
    %375 = vmatpush.msra.mxu0 %v211
    %376 = vmatpush.msra.mxu0 %v210
    %377 = vmatpush.msra.mxu0 %v209
    %378 = vmatmul.f32.gmra.mxu0 %v360
    %v379 = vpop.f32.mrf.mxu0
    %v380 = vadd.f32 0.0, %v379
    %381 = vdwg.mxu0
    %v382 = vadd.f32 %v359, %v380
    %v383 = vxor.u32 %v382, 2147483648
    %v384 = vmul.f32 %v383, 1.442695
    %v385 = vpow.pop %v384
    %v386 = vadd.f32 %v385, 1.0
    %v387 = vrcp.pop %v386
    %v388 = vmul.f32 %v386, %v387
    %v389 = vsub.f32 1.0, %v388
    %v390 = vmul.f32 %v387, %v389
    %v391 = vadd.f32 %v387, %v390
    %vm392 = vweird.f32 %v386
    %vm393 = vweird.f32 %v387
    %vm394 = vmor %vm392, %vm393
    %v395 = vsel %vm394, %v387, %v391
    %v396 = vand.u32 2147483647, %v386
    %vm397 = vcmp.eq.f32.partialorder %v396, 8.507059e+37
    %v398 = vand.u32 %v386, 2147483648
    %v399 = vor.u32 1.1754944e-38, %v398
    %v400 = vsel %vm397, %v399, %v395
    %v401 = vmul.f32 1.0, %v400
    %v402 = vadd.f32 %v380, %v261
    %404 = vrot.lane.b32.xlu0 %v402, 64
    %v405 = vpop.permute.xlu0 %404
    %v407 = vmul.f32 %v401, %v405
    %409 = vrot.lane.b32.xlu0 %v407, 64
    %v410 = vpop.permute.xlu0 %409
    %v412 = vadd.f32 %v359, %v410
    %v413 = vtanh.pop %v412
    %v414 = vsub.f32 1.0, %v401
    %416 = vrot.lane.b32.xlu0 %v413, 96
    %v417 = vpop.permute.xlu0 %416
    %v419 = vmul.f32 %v414, %v417
    %v420 = vmul.f32 %v401, %v351
    %v421 = vadd.f32 %v419, %v420
    %423 = vrot.lane.b32.xlu0 %v421, 96
    %v424 = vpop.permute.xlu0 %423
    %s426 = scalar_lea.vmem [#allocation3], 16
    %427 = vst.msk [vmem:[%s426] sm:$0xff] %vm134, %v424
    %s428 = scalar_lea.vmem [#allocation2], 24
    %v429 = vld [vmem:[%s428] sm:$0xff]
    %v430 = vsel %vm134, %v424, 0
    %432 = vmatpush.msra.mxu0 0.0
    %433 = vmatpush.msra.mxu0 0.0
    %434 = vmatpush.msra.mxu0 0.0
    %435 = vmatpush.msra.mxu0 0.0
    %436 = vmatpush.msra.mxu0 0.0
    %437 = vmatpush.msra.mxu0 0.0
    %438 = vmatpush.msra.mxu0 0.0
    %439 = vmatpush.msra.mxu0 0.0
    %440 = vmatpush.msra.mxu0 0.0
    %441 = vmatpush.msra.mxu0 0.0
    %442 = vmatpush.msra.mxu0 0.0
    %443 = vmatpush.msra.mxu0 0.0
    %444 = vmatpush.msra.mxu0 %v212
    %445 = vmatpush.msra.mxu0 %v211
    %446 = vmatpush.msra.mxu0 %v210
    %447 = vmatpush.msra.mxu0 %v209
    %448 = vmatmul.f32.gmra.mxu0 %v430
    %v449 = vpop.f32.mrf.mxu0
    %v450 = vadd.f32 0.0, %v449
    %451 = vdwg.mxu0
    %v452 = vadd.f32 %v429, %v450
    %v453 = vxor.u32 %v452, 2147483648
    %v454 = vmul.f32 %v453, 1.442695
    %v455 = vpow.pop %v454
    %v456 = vadd.f32 %v455, 1.0
    %v457 = vrcp.pop %v456
    %v458 = vmul.f32 %v456, %v457
    %v459 = vsub.f32 1.0, %v458
    %v460 = vmul.f32 %v457, %v459
    %v461 = vadd.f32 %v457, %v460
    %vm462 = vweird.f32 %v456
    %vm463 = vweird.f32 %v457
    %vm464 = vmor %vm462, %vm463
    %v465 = vsel %vm464, %v457, %v461
    %v466 = vand.u32 2147483647, %v456
    %vm467 = vcmp.eq.f32.partialorder %v466, 8.507059e+37
    %v468 = vand.u32 %v456, 2147483648
    %v469 = vor.u32 1.1754944e-38, %v468
    %v470 = vsel %vm467, %v469, %v465
    %v471 = vmul.f32 1.0, %v470
    %v472 = vadd.f32 %v450, %v261
    %474 = vrot.lane.b32.xlu0 %v472, 64
    %v475 = vpop.permute.xlu0 %474
    %v477 = vmul.f32 %v471, %v475
    %479 = vrot.lane.b32.xlu0 %v477, 64
    %v480 = vpop.permute.xlu0 %479
    %v482 = vadd.f32 %v429, %v480
    %v483 = vtanh.pop %v482
    %v484 = vsub.f32 1.0, %v471
    %486 = vrot.lane.b32.xlu0 %v483, 96
    %v487 = vpop.permute.xlu0 %486
    %v489 = vmul.f32 %v484, %v487
    %v490 = vmul.f32 %v471, %v421
    %v491 = vadd.f32 %v489, %v490
    %493 = vrot.lane.b32.xlu0 %v491, 96
    %v494 = vpop.permute.xlu0 %493
    %s496 = scalar_lea.vmem [#allocation3], 24
    %497 = vst.msk [vmem:[%s496] sm:$0xff] %vm134, %v494
    %s498 = scalar_lea.vmem [#allocation2], 32
    %v499 = vld [vmem:[%s498] sm:$0xff]
    %v500 = vsel %vm134, %v494, 0
    %502 = vmatpush.msra.mxu0 0.0
    %503 = vmatpush.msra.mxu0 0.0
    %504 = vmatpush.msra.mxu0 0.0
    %505 = vmatpush.msra.mxu0 0.0
    %506 = vmatpush.msra.mxu0 0.0
    %507 = vmatpush.msra.mxu0 0.0
    %508 = vmatpush.msra.mxu0 0.0
    %509 = vmatpush.msra.mxu0 0.0
    %510 = vmatpush.msra.mxu0 0.0
    %511 = vmatpush.msra.mxu0 0.0
    %512 = vmatpush.msra.mxu0 0.0
    %513 = vmatpush.msra.mxu0 0.0
    %514 = vmatpush.msra.mxu0 %v212
    %515 = vmatpush.msra.mxu0 %v211
    %516 = vmatpush.msra.mxu0 %v210
    %517 = vmatpush.msra.mxu0 %v209
    %518 = vmatmul.f32.gmra.mxu0 %v500
    %v519 = vpop.f32.mrf.mxu0
    %v520 = vadd.f32 0.0, %v519
    %521 = vdwg.mxu0
    %v522 = vadd.f32 %v499, %v520
    %v523 = vxor.u32 %v522, 2147483648
    %v524 = vmul.f32 %v523, 1.442695
    %v525 = vpow.pop %v524
    %v526 = vadd.f32 %v525, 1.0
    %v527 = vrcp.pop %v526
    %v528 = vmul.f32 %v526, %v527
    %v529 = vsub.f32 1.0, %v528
    %v530 = vmul.f32 %v527, %v529
    %v531 = vadd.f32 %v527, %v530
    %vm532 = vweird.f32 %v526
    %vm533 = vweird.f32 %v527
    %vm534 = vmor %vm532, %vm533
    %v535 = vsel %vm534, %v527, %v531
    %v536 = vand.u32 2147483647, %v526
    %vm537 = vcmp.eq.f32.partialorder %v536, 8.507059e+37
    %v538 = vand.u32 %v526, 2147483648
    %v539 = vor.u32 1.1754944e-38, %v538
    %v540 = vsel %vm537, %v539, %v535
    %v541 = vmul.f32 1.0, %v540
    %v542 = vadd.f32 %v520, %v261
    %544 = vrot.lane.b32.xlu0 %v542, 64
    %v545 = vpop.permute.xlu0 %544
    %v547 = vmul.f32 %v541, %v545
    %549 = vrot.lane.b32.xlu0 %v547, 64
    %v550 = vpop.permute.xlu0 %549
    %v552 = vadd.f32 %v499, %v550
    %v553 = vtanh.pop %v552
    %v554 = vsub.f32 1.0, %v541
    %556 = vrot.lane.b32.xlu0 %v553, 96
    %v557 = vpop.permute.xlu0 %556
    %v559 = vmul.f32 %v554, %v557
    %v560 = vmul.f32 %v541, %v491
    %v561 = vadd.f32 %v559, %v560
    %563 = vrot.lane.b32.xlu0 %v561, 96
    %v564 = vpop.permute.xlu0 %563
    %s566 = scalar_lea.vmem [#allocation3], 32
    %567 = vst.msk [vmem:[%s566] sm:$0xff] %vm134, %v564
    %s568 = scalar_lea.vmem [#allocation2], 40
    %v569 = vld [vmem:[%s568] sm:$0xff]
    %v570 = vsel %vm134, %v564, 0
    %572 = vmatpush.msra.mxu0 0.0
    %573 = vmatpush.msra.mxu0 0.0
    %574 = vmatpush.msra.mxu0 0.0
    %575 = vmatpush.msra.mxu0 0.0
    %576 = vmatpush.msra.mxu0 0.0
    %577 = vmatpush.msra.mxu0 0.0
    %578 = vmatpush.msra.mxu0 0.0
    %579 = vmatpush.msra.mxu0 0.0
    %580 = vmatpush.msra.mxu0 0.0
    %581 = vmatpush.msra.mxu0 0.0
    %582 = vmatpush.msra.mxu0 0.0
    %583 = vmatpush.msra.mxu0 0.0
    %584 = vmatpush.msra.mxu0 %v212
    %585 = vmatpush.msra.mxu0 %v211
    %586 = vmatpush.msra.mxu0 %v210
    %587 = vmatpush.msra.mxu0 %v209
    %588 = vmatmul.f32.gmra.mxu0 %v570
    %v589 = vpop.f32.mrf.mxu0
    %v590 = vadd.f32 0.0, %v589
    %591 = vdwg.mxu0
    %v592 = vadd.f32 %v569, %v590
    %v593 = vxor.u32 %v592, 2147483648
    %v594 = vmul.f32 %v593, 1.442695
    %v595 = vpow.pop %v594
    %v596 = vadd.f32 %v595, 1.0
    %v597 = vrcp.pop %v596
    %v598 = vmul.f32 %v596, %v597
    %v599 = vsub.f32 1.0, %v598
    %v600 = vmul.f32 %v597, %v599
    %v601 = vadd.f32 %v597, %v600
    %vm602 = vweird.f32 %v596
    %vm603 = vweird.f32 %v597
    %vm604 = vmor %vm602, %vm603
    %v605 = vsel %vm604, %v597, %v601
    %v606 = vand.u32 2147483647, %v596
    %vm607 = vcmp.eq.f32.partialorder %v606, 8.507059e+37
    %v608 = vand.u32 %v596, 2147483648
    %v609 = vor.u32 1.1754944e-38, %v608
    %v610 = vsel %vm607, %v609, %v605
    %v611 = vmul.f32 1.0, %v610
    %v612 = vadd.f32 %v590, %v261
    %614 = vrot.lane.b32.xlu0 %v612, 64
    %v615 = vpop.permute.xlu0 %614
    %v617 = vmul.f32 %v611, %v615
    %619 = vrot.lane.b32.xlu0 %v617, 64
    %v620 = vpop.permute.xlu0 %619
    %v622 = vadd.f32 %v569, %v620
    %v623 = vtanh.pop %v622
    %v624 = vsub.f32 1.0, %v611
    %626 = vrot.lane.b32.xlu0 %v623, 96
    %v627 = vpop.permute.xlu0 %626
    %v629 = vmul.f32 %v624, %v627
    %v630 = vmul.f32 %v611, %v561
    %v631 = vadd.f32 %v629, %v630
    %633 = vrot.lane.b32.xlu0 %v631, 96
    %v634 = vpop.permute.xlu0 %633
    %s636 = scalar_lea.vmem [#allocation3], 40
    %637 = vst.msk [vmem:[%s636] sm:$0xff] %vm134, %v634
    %s638 = scalar_lea.vmem [#allocation2], 48
    %v639 = vld [vmem:[%s638] sm:$0xff]
    %v640 = vsel %vm134, %v634, 0
    %642 = vmatpush.msra.mxu0 0.0
    %643 = vmatpush.msra.mxu0 0.0
    %644 = vmatpush.msra.mxu0 0.0
    %645 = vmatpush.msra.mxu0 0.0
    %646 = vmatpush.msra.mxu0 0.0
    %647 = vmatpush.msra.mxu0 0.0
    %648 = vmatpush.msra.mxu0 0.0
    %649 = vmatpush.msra.mxu0 0.0
    %650 = vmatpush.msra.mxu0 0.0
    %651 = vmatpush.msra.mxu0 0.0
    %652 = vmatpush.msra.mxu0 0.0
    %653 = vmatpush.msra.mxu0 0.0
    %654 = vmatpush.msra.mxu0 %v212
    %655 = vmatpush.msra.mxu0 %v211
    %656 = vmatpush.msra.mxu0 %v210
    %657 = vmatpush.msra.mxu0 %v209
    %658 = vmatmul.f32.gmra.mxu0 %v640
    %v659 = vpop.f32.mrf.mxu0
    %v660 = vadd.f32 0.0, %v659
    %661 = vdwg.mxu0
    %v662 = vadd.f32 %v639, %v660
    %v663 = vxor.u32 %v662, 2147483648
    %v664 = vmul.f32 %v663, 1.442695
    %v665 = vpow.pop %v664
    %v666 = vadd.f32 %v665, 1.0
    %v667 = vrcp.pop %v666
    %v668 = vmul.f32 %v666, %v667
    %v669 = vsub.f32 1.0, %v668
    %v670 = vmul.f32 %v667, %v669
    %v671 = vadd.f32 %v667, %v670
    %vm672 = vweird.f32 %v666
    %vm673 = vweird.f32 %v667
    %vm674 = vmor %vm672, %vm673
    %v675 = vsel %vm674, %v667, %v671
    %v676 = vand.u32 2147483647, %v666
    %vm677 = vcmp.eq.f32.partialorder %v676, 8.507059e+37
    %v678 = vand.u32 %v666, 2147483648
    %v679 = vor.u32 1.1754944e-38, %v678
    %v680 = vsel %vm677, %v679, %v675
    %v681 = vmul.f32 1.0, %v680
    %v682 = vadd.f32 %v660, %v261
    %684 = vrot.lane.b32.xlu0 %v682, 64
    %v685 = vpop.permute.xlu0 %684
    %v687 = vmul.f32 %v681, %v685
    %689 = vrot.lane.b32.xlu0 %v687, 64
    %v690 = vpop.permute.xlu0 %689
    %v692 = vadd.f32 %v639, %v690
    %v693 = vtanh.pop %v692
    %v694 = vsub.f32 1.0, %v681
    %696 = vrot.lane.b32.xlu0 %v693, 96
    %v697 = vpop.permute.xlu0 %696
    %v699 = vmul.f32 %v694, %v697
    %v700 = vmul.f32 %v681, %v631
    %v701 = vadd.f32 %v699, %v700
    %703 = vrot.lane.b32.xlu0 %v701, 96
    %v704 = vpop.permute.xlu0 %703
    %s706 = scalar_lea.vmem [#allocation3], 48
    %707 = vst.msk [vmem:[%s706] sm:$0xff] %vm134, %v704
    %s708 = scalar_lea.vmem [#allocation2], 56
    %v709 = vld [vmem:[%s708] sm:$0xff]
    %v710 = vsel %vm134, %v704, 0
    %712 = vmatpush.msra.mxu0 0.0
    %713 = vmatpush.msra.mxu0 0.0
    %714 = vmatpush.msra.mxu0 0.0
    %715 = vmatpush.msra.mxu0 0.0
    %716 = vmatpush.msra.mxu0 0.0
    %717 = vmatpush.msra.mxu0 0.0
    %718 = vmatpush.msra.mxu0 0.0
    %719 = vmatpush.msra.mxu0 0.0
    %720 = vmatpush.msra.mxu0 0.0
    %721 = vmatpush.msra.mxu0 0.0
    %722 = vmatpush.msra.mxu0 0.0
    %723 = vmatpush.msra.mxu0 0.0
    %724 = vmatpush.msra.mxu0 %v212
    %725 = vmatpush.msra.mxu0 %v211
    %726 = vmatpush.msra.mxu0 %v210
    %727 = vmatpush.msra.mxu0 %v209
    %728 = vmatmul.f32.gmra.mxu0 %v710
    %v729 = vpop.f32.mrf.mxu0
    %v730 = vadd.f32 0.0, %v729
    %731 = vdwg.mxu0
    %v732 = vadd.f32 %v709, %v730
    %v733 = vxor.u32 %v732, 2147483648
    %v734 = vmul.f32 %v733, 1.442695
    %v735 = vpow.pop %v734
    %v736 = vadd.f32 %v735, 1.0
    %v737 = vrcp.pop %v736
    %v738 = vmul.f32 %v736, %v737
    %v739 = vsub.f32 1.0, %v738
    %v740 = vmul.f32 %v737, %v739
    %v741 = vadd.f32 %v737, %v740
    %vm742 = vweird.f32 %v736
    %vm743 = vweird.f32 %v737
    %vm744 = vmor %vm742, %vm743
    %v745 = vsel %vm744, %v737, %v741
    %v746 = vand.u32 2147483647, %v736
    %vm747 = vcmp.eq.f32.partialorder %v746, 8.507059e+37
    %v748 = vand.u32 %v736, 2147483648
    %v749 = vor.u32 1.1754944e-38, %v748
    %v750 = vsel %vm747, %v749, %v745
    %v751 = vmul.f32 1.0, %v750
    %v752 = vadd.f32 %v730, %v261
    %754 = vrot.lane.b32.xlu0 %v752, 64
    %v755 = vpop.permute.xlu0 %754
    %v757 = vmul.f32 %v751, %v755
    %759 = vrot.lane.b32.xlu0 %v757, 64
    %v760 = vpop.permute.xlu0 %759
    %v762 = vadd.f32 %v709, %v760
    %v763 = vtanh.pop %v762
    %v764 = vsub.f32 1.0, %v751
    %766 = vrot.lane.b32.xlu0 %v763, 96
    %v767 = vpop.permute.xlu0 %766
    %v769 = vmul.f32 %v764, %v767
    %v770 = vmul.f32 %v751, %v701
    %v771 = vadd.f32 %v769, %v770
    %773 = vrot.lane.b32.xlu0 %v771, 96
    %v774 = vpop.permute.xlu0 %773
    %s776 = scalar_lea.vmem [#allocation3], 56
    %777 = vst.msk [vmem:[%s776] sm:$0xff] %vm134, %v774
    %778 = vst.msk [vmem:[#allocation5] sm:$0xff] %vm134, %v774
    // Predicated region
    $region30: #{tpu_custom_call.1} parent=1 // pred_check
      _
    $region31: #{tpu_custom_call.1} parent=1 // pred_check_branch
      %780 = sbr.rel (0) target = $region33
    $region32: #{tpu_custom_call.1} parent=1 // pred_region
      %782 = vsyncadd [#allocation4], 0
      %s783 = sshll.u32 [#allocation3], 4
      %s784 = int_to_ptr.vmem [resolvable:$true] %s783
      %s785 = sshll.u32 %s7, 4
      %s786 = int_to_ptr.hbm [resolvable:$true] %s785
      %791 = dma.vmem_to_hbm [thread:$0]  %s784, 1024, %s786, [#allocation4], 128, 128, 8
    $region33: #{tpu_custom_call.1} parent=1 // pred_fallthru
      _
    // Predicated region
    $region34: #{tpu_custom_call.1} parent=1 // pred_check
      _
    $region35: #{tpu_custom_call.1} parent=1 // pred_check_branch
      %793 = sbr.rel (0) target = $region37
    $region36: #{tpu_custom_call.1} parent=1 // pred_region
      %795 = vsyncadd [#allocation6], 0
      %s797 = sshll.u32 [#allocation5], 4
      %s798 = int_to_ptr.vmem [resolvable:$true] %s797
      %s799 = sshll.u32 %s8, 4
      %s800 = int_to_ptr.hbm [resolvable:$true] %s799
      %802 = dma.vmem_to_hbm [thread:$0]  %s798, 128, %s800, [#allocation6]
    $region37: #{tpu_custom_call.1} parent=1 // pred_fallthru
      _
    // Predicated region
    $region38: #{tpu_custom_call.1} parent=1 // pred_check
      _
    $region39: #{tpu_custom_call.1} parent=1 // pred_check_branch
      %804 = sbr.rel (0) target = $region41
    $region40: #{tpu_custom_call.1} parent=1 // pred_region
      %806 = dma.done [#allocation4], 1024
    $region41: #{tpu_custom_call.1} parent=1 // pred_fallthru
      _
    // Predicated region
    $region42: #{tpu_custom_call.1} parent=1 // pred_check
      _
    $region43: #{tpu_custom_call.1} parent=1 // pred_check_branch
      %808 = sbr.rel (0) target = $region45
    $region44: #{tpu_custom_call.1} parent=1 // pred_region
      %810 = dma.done [#allocation6], 128
    $region45: #{tpu_custom_call.1} parent=1 // pred_fallthru
      _
    %811 = vsyncpa [#allocation4], 1
    %812 = vsyncpa [#allocation6], 1

</llo_original>
